<compile_context>
chip_gen: v5e
topology: v5e:2x2
jax: 0.10.0
libtpu: 0.0.40
codegen_flags: <defaults>
</compile_context>

<pallas_src>
import functools

import jax
import jax.numpy as jnp
from jax.experimental import pallas as pl
from jax.experimental.pallas import tpu as pltpu

_LANE = 128
_SUBLANE = 8
_NEG_BIG = -1e30                    # bias for padded class columns -> drop out of LSE
_VMEM_BUDGET = 40 * 1024 * 1024     # working-set budget, safe for v7x's 64 MiB VMEM
_VMEM_LIMIT = 48 * 1024 * 1024      # scoped limit: > 32 MiB default, < v7x physical


def _round_up(n, m):
    return (n + m - 1) // m * m


def _entity_nn_kernel(x_ref, lbl_ref, cw_ref,
                      w1_ref, b1_ref, w2_ref, b2_ref, w3_ref, b3_ref,
                      logits_ref, partial_ref,
                      *, batch, tile_b, num_classes):
    """One batch tile: Linear->ReLU->Linear->ReLU->Linear + weighted-CE partials."""
    # Stream x in its native dtype, cast to bf16 in-kernel (no wrapper HBM pass).
    x = x_ref[...].astype(jnp.bfloat16)                               # (tb, D_in)

    # hidden layer 1 (bias add / ReLU in f32; Dropout = identity in eval mode)
    h1 = jnp.dot(x, w1_ref[...], preferred_element_type=jnp.float32) + b1_ref[...]
    h1 = jnp.maximum(h1, 0.0)

    # hidden layer 2
    h2 = jnp.dot(h1.astype(jnp.bfloat16), w2_ref[...],
                 preferred_element_type=jnp.float32) + b2_ref[...]
    h2 = jnp.maximum(h2, 0.0)

    # output layer over the 128-lane padded class width (MXU/LSE friendly);
    # padded columns have zero weights and bias -1e30 so they vanish from the LSE.
    logits = jnp.dot(h2.astype(jnp.bfloat16), w3_ref[...],
                     preferred_element_type=jnp.float32) + b3_ref[...]  # (tb, cp)

    # Store only the true num_classes columns (narrow masked stores are cheap;
    # the big win is not writing 128 padded f32 lanes per row to HBM).
    logits_ref[...] = logits[:, :num_classes].astype(logits_ref.dtype)

    # weighted cross-entropy partial sums for this tile (all f32)
    m = jnp.max(logits, axis=-1, keepdims=True)
    lse = m + jnp.log(jnp.sum(jnp.exp(logits - m), axis=-1, keepdims=True))
    logp = logits - lse                                               # (tb, cp)

    lbl = lbl_ref[...]                                                # (tb, 1) int32
    col = jax.lax.broadcasted_iota(jnp.int32, logp.shape, 1)
    onehot = (col == lbl).astype(jnp.float32)                         # zero row if lbl < 0
    nll = -jnp.sum(onehot * logp, axis=-1, keepdims=True)             # (tb, 1)
    w_per = jnp.sum(onehot * cw_ref[...], axis=-1, keepdims=True)     # (tb, 1)

    # Row-validity mask: the last grid step may overhang B (garbage rows are
    # excluded via where(), so even NaN/Inf garbage cannot leak into the sums).
    row = (pl.program_id(0) * tile_b
           + jax.lax.broadcasted_iota(jnp.int32, nll.shape, 0))
    valid = row < batch
    num = jnp.sum(jnp.where(valid, w_per * nll, 0.0))
    den = jnp.sum(jnp.where(valid, w_per, 0.0))

    lane = jax.lax.broadcasted_iota(jnp.int32, partial_ref.shape, 2)  # (1, 1, 128)
    partial_ref[...] = jnp.where(lane == 0, num, jnp.where(lane == 1, den, 0.0))


def _pick_tile_b(B, d_in, h1p, h2p, cp, num_classes, requested):
    """Batch tile: >=2 grid steps when possible (v7x megacore), VMEM-budgeted."""
    tb = min(_round_up(requested, _SUBLANE),
             max(_SUBLANE, _round_up(pl.cdiv(B, 2), _SUBLANE)))

    def vmem_bytes(t):
        stream = 2 * t * (d_in * 4 + num_classes * 4) + 2 * _LANE * 4  # dbl-buffered I/O
        resident = ((d_in * h1p + h1p * h2p + h2p * cp) * 2            # bf16 weights
                    + (h1p + h2p + 2 * cp) * 4)                        # f32 biases + cw
        interm = t * (h1p + h2p + cp) * (4 + 2)                        # f32 acts + bf16 casts
        return stream + resident + interm

    while tb > _SUBLANE and vmem_bytes(tb) > _VMEM_BUDGET:
        tb = max(_SUBLANE, _round_up(tb // 2, _SUBLANE))
    return tb


@functools.partial(jax.jit, static_argnames=("num_classes", "tile_b"))
def _forward_impl(x, labels, cw_p, w1p, b1p, w2p, b2p, w3p, b3p,
                  *, num_classes, tile_b):
    B, d_in = x.shape
    h1p, h2p, cp = w1p.shape[1], w2p.shape[1], w3p.shape[1]

    tb = _pick_tile_b(B, d_in, h1p, h2p, cp, num_classes, tile_b)
    g = pl.cdiv(B, tb)

    lbl2 = labels.reshape(B, 1).astype(jnp.int32)

    row = lambda i: (i, 0)
    const = lambda i: (0, 0)

    kernel = functools.partial(_entity_nn_kernel, batch=B, tile_b=tb,
                               num_classes=num_classes)

    flops = 2 * B * (d_in * h1p + h1p * h2p + h2p * cp)
    bytes_accessed = (x.size * x.dtype.itemsize + lbl2.size * 4
                      + B * num_classes * 4 + g * _LANE * 4
                      + (w1p.size + w2p.size + w3p.size) * 2
                      + (b1p.size + b2p.size + b3p.size + cw_p.size) * 4)

    logits, partials = pl.pallas_call(
        kernel,
        out_shape=(
            jax.ShapeDtypeStruct((B, num_classes), jnp.float32),   # true-width logits
            jax.ShapeDtypeStruct((g, 1, _LANE), jnp.float32),      # (num, den) per tile
        ),
        grid_spec=pltpu.PrefetchScalarGridSpec(
            num_scalar_prefetch=0,
            grid=(g,),
            in_specs=[
                pl.BlockSpec((tb, d_in), row),      # x tile (streamed, native dtype)
                pl.BlockSpec((tb, 1), row),         # labels tile (streamed)
                pl.BlockSpec((1, cp), const),       # class weights (resident)
                pl.BlockSpec((d_in, h1p), const),   # w1 (resident)
                pl.BlockSpec((1, h1p), const),      # b1
                pl.BlockSpec((h1p, h2p), const),    # w2
                pl.BlockSpec((1, h2p), const),      # b2
                pl.BlockSpec((h2p, cp), const),     # w3
                pl.BlockSpec((1, cp), const),       # b3
            ],
            out_specs=(
                pl.BlockSpec((tb, num_classes), row),
                pl.BlockSpec((1, 1, _LANE), lambda i: (i, 0, 0)),
            ),
        ),
        compiler_params=pltpu.CompilerParams(
            dimension_semantics=("parallel",),
            vmem_limit_bytes=_VMEM_LIMIT,
        ),
        cost_estimate=pl.CostEstimate(
            flops=flops, transcendentals=B * (cp + 1),
            bytes_accessed=bytes_accessed),
    )(x, lbl2, cw_p, w1p, b1p, w2p, b2p, w3p, b3p)

    num = jnp.sum(partials[:, 0, 0])
    den = jnp.sum(partials[:, 0, 1])
    return logits, num, den


def prepare_params(params, class_weights):
    """Pad/cast weights to lane-dense bf16 ONCE (hoisted out of the per-call path)."""
    w1, b1, w2, b2, w3, b3 = params
    d_in, H1 = w1.shape
    H2, C = w2.shape[1], w3.shape[1]
    h1p = _round_up(H1, _LANE)
    h2p = _round_up(H2, _LANE)
    cp = _round_up(C, _LANE)

    w1p = jnp.pad(w1, ((0, 0), (0, h1p - H1))).astype(jnp.bfloat16)
    b1p = jnp.pad(b1.reshape(1, H1).astype(jnp.float32), ((0, 0), (0, h1p - H1)))
    w2p = jnp.pad(w2, ((0, h1p - H1), (0, h2p - H2))).astype(jnp.bfloat16)
    b2p = jnp.pad(b2.reshape(1, H2).astype(jnp.float32), ((0, 0), (0, h2p - H2)))
    w3p = jnp.pad(w3, ((0, h2p - H2), (0, cp - C))).astype(jnp.bfloat16)
    # Padded class columns get bias -1e30 so they never affect max / LSE.
    b3p = jnp.pad(b3.reshape(1, C).astype(jnp.float32),
                  ((0, 0), (0, cp - C)), constant_values=_NEG_BIG)
    cwp = jnp.pad(jnp.asarray(class_weights, jnp.float32).reshape(1, C),
                  ((0, 0), (0, cp - C)))
    return {"arrays": (cwp, w1p, b1p, w2p, b2p, w3p, b3p), "num_classes": C}


def entity_nn_forward(x, labels, prepared, tile_b=2048):
    """x: [B, D_in] float, labels: [B] int (or None). Returns (logits[B,C], loss|None)."""
    arrays = prepared["arrays"]
    C = prepared["num_classes"]
    if labels is None:
        dummy = jnp.full((x.shape[0],), -1, jnp.int32)   # zero one-hot rows
        logits, _, _ = _forward_impl(x, dummy, *arrays, num_classes=C, tile_b=tile_b)
        return logits, None                              # loss skipped -> no 0/0 NaN path
    logits, num, den = _forward_impl(x, jnp.asarray(labels, jnp.int32), *arrays,
                                     num_classes=C, tile_b=tile_b)
    # Same hazard as PyTorch's weighted-mean CE if all class weights are zero.
    return logits, num / den


def init_params(key, input_dim, hidden_dims, num_classes):
    """Deterministic PyTorch-Linear-like uniform init (f32 master weights)."""
    dims = [input_dim] + list(hidden_dims) + [num_classes]
    params = []
    for i in range(len(dims) - 1):
        fan_in, fan_out = dims[i], dims[i + 1]
        key, kw, kb = jax.random.split(key, 3)
        bound = 1.0 / jnp.sqrt(jnp.float32(fan_in))
        w = jax.random.uniform(kw, (fan_in, fan_out), jnp.float32, -bound, bound)
        b = jax.random.uniform(kb, (fan_out,), jnp.float32, -bound, bound)
        params.extend([w, b])
    return tuple(params)


if __name__ == "__main__":
    # Shapes implied by the module defaults: hidden_dims=[64, 32],
    # class_weights=[0.5, 0.5] -> num_classes=2.
    B, INPUT_DIM, NUM_CLASSES = 8, 32, 2
    HIDDEN_DIMS = [64, 32]
    CLASS_WEIGHTS = [0.5, 0.5]

    key = jax.random.PRNGKey(0)
    key, kx, kl, kp = jax.random.split(key, 4)

    x = jax.random.normal(kx, (B, INPUT_DIM), jnp.float32)
    labels = jax.random.randint(kl, (B,), 0, NUM_CLASSES)
    class_weights = jnp.asarray(CLASS_WEIGHTS, jnp.float32)

    params = init_params(kp, INPUT_DIM, HIDDEN_DIMS, NUM_CLASSES)
    prepared = prepare_params(params, class_weights)   # hoisted: pad/cast weights once

    logits, loss = entity_nn_forward(x, labels, prepared)
    jax.block_until_ready((logits, loss))

    # Pure-JAX reference using the SAME bf16-matmul / f32-accumulate recipe
    # (numerics are bf16-operand by design; not bit-identical to fp32 PyTorch).
    w1, b1, w2, b2, w3, b3 = params
    xb = x.astype(jnp.bfloat16)
    w1b, w2b, w3b = (w.astype(jnp.bfloat16) for w in (w1, w2, w3))
    h = jnp.maximum(jnp.dot(xb, w1b, preferred_element_type=jnp.float32) + b1, 0.0)
    h = jnp.maximum(jnp.dot(h.astype(jnp.bfloat16), w2b,
                            preferred_element_type=jnp.float32) + b2, 0.0)
    ref_logits = jnp.dot(h.astype(jnp.bfloat16), w3b,
                         preferred_element_type=jnp.float32) + b3
    logp = jax.nn.log_softmax(ref_logits, axis=-1)
    nll = -jnp.take_along_axis(logp, labels[:, None], axis=-1)[:, 0]
    w_per = class_weights[labels]
    ref_loss = jnp.sum(w_per * nll) / jnp.sum(w_per)

    assert logits.shape == (B, NUM_CLASSES)
    assert jnp.allclose(logits, ref_logits, atol=1e-3, rtol=1e-3)
    assert jnp.allclose(loss, ref_loss, atol=1e-3, rtol=1e-3)

    # labels=None path (no loss, no NaN) sanity check.
    logits_only, no_loss = entity_nn_forward(x, None, prepared)
    jax.block_until_ready(logits_only)
    assert no_loss is None
    assert jnp.allclose(logits_only, ref_logits, atol=1e-3, rtol=1e-3)

    print("KERNEL_OK")
</pallas_src>

<mosaic_0001>
module attributes {stable_mosaic.version = 11 : i64} {
  func.func @_entity_nn_kernel(%arg0: i32, %arg1: memref<8x32xf32, #tpu.memory_space<vmem>>, %arg2: memref<8x1xi32, #tpu.memory_space<vmem>>, %arg3: memref<1x128xf32, #tpu.memory_space<vmem>>, %arg4: memref<32x128xbf16, #tpu.memory_space<vmem>>, %arg5: memref<1x128xf32, #tpu.memory_space<vmem>>, %arg6: memref<128x128xbf16, #tpu.memory_space<vmem>>, %arg7: memref<1x128xf32, #tpu.memory_space<vmem>>, %arg8: memref<128x128xbf16, #tpu.memory_space<vmem>>, %arg9: memref<1x128xf32, #tpu.memory_space<vmem>>, %arg10: memref<8x2xf32, #tpu.memory_space<vmem>>, %arg11: memref<1x1x128xf32, #tpu.memory_space<vmem>>) attributes {dimension_semantics = [#tpu.dimension_semantics<parallel>], iteration_bounds = array<i64: 1>, scalar_prefetch = 0 : i64, scratch_operands = 0 : i64, tpu.core_type = #tpu.core_type<tc>, window_params = [{transform_indices = @transform_0, window_bounds = array<i64: 8, 32>}, {transform_indices = @transform_1, window_bounds = array<i64: 8, 1>}, {pipeline_mode = #tpu.pipeline_mode<synchronous>, transform_indices = @transform_2, window_bounds = array<i64: 1, 128>}, {pipeline_mode = #tpu.pipeline_mode<synchronous>, transform_indices = @transform_3, window_bounds = array<i64: 32, 128>}, {pipeline_mode = #tpu.pipeline_mode<synchronous>, transform_indices = @transform_4, window_bounds = array<i64: 1, 128>}, {pipeline_mode = #tpu.pipeline_mode<synchronous>, transform_indices = @transform_5, window_bounds = array<i64: 128, 128>}, {pipeline_mode = #tpu.pipeline_mode<synchronous>, transform_indices = @transform_6, window_bounds = array<i64: 1, 128>}, {pipeline_mode = #tpu.pipeline_mode<synchronous>, transform_indices = @transform_7, window_bounds = array<i64: 128, 128>}, {pipeline_mode = #tpu.pipeline_mode<synchronous>, transform_indices = @transform_8, window_bounds = array<i64: 1, 128>}, {transform_indices = @transform_9, window_bounds = array<i64: 8, 2>}, {transform_indices = @transform_10, window_bounds = array<i64: 1, 1, 128>}]} {
    %c0 = arith.constant 0 : index
    %c0_0 = arith.constant 0 : index
    %0 = vector.load %arg1[%c0, %c0_0] : memref<8x32xf32, #tpu.memory_space<vmem>>, vector<8x32xf32>
    %1 = arith.truncf %0 : vector<8x32xf32> to vector<8x32xbf16>
    %c0_1 = arith.constant 0 : index
    %c0_2 = arith.constant 0 : index
    %2 = vector.load %arg4[%c0_1, %c0_2] : memref<32x128xbf16, #tpu.memory_space<vmem>>, vector<32x128xbf16>
    %cst = arith.constant dense<0.000000e+00> : vector<8x128xf32>
    %3 = tpu.matmul %1, %2, %cst {dimension_numbers = #tpu.dot_dimension_numbers<[1], [0], [0], [1], [0, 0, 1, 1], [], []>} : vector<8x32xbf16>, vector<32x128xbf16>, vector<8x128xf32> -> vector<8x128xf32>
    %c0_3 = arith.constant 0 : index
    %c0_4 = arith.constant 0 : index
    %4 = vector.load %arg5[%c0_3, %c0_4] : memref<1x128xf32, #tpu.memory_space<vmem>>, vector<1x128xf32>
    %5 = vector.broadcast %4 : vector<1x128xf32> to vector<8x128xf32>
    %6 = arith.addf %3, %5 : vector<8x128xf32>
    %cst_5 = arith.constant 0.000000e+00 : f32
    %7 = vector.broadcast %cst_5 : f32 to vector<8x128xf32>
    %8 = arith.maximumf %6, %7 : vector<8x128xf32>
    %9 = arith.truncf %8 : vector<8x128xf32> to vector<8x128xbf16>
    %c0_6 = arith.constant 0 : index
    %c0_7 = arith.constant 0 : index
    %10 = vector.load %arg6[%c0_6, %c0_7] : memref<128x128xbf16, #tpu.memory_space<vmem>>, vector<128x128xbf16>
    %cst_8 = arith.constant dense<0.000000e+00> : vector<8x128xf32>
    %11 = tpu.matmul %9, %10, %cst_8 {dimension_numbers = #tpu.dot_dimension_numbers<[1], [0], [0], [1], [0, 0, 1, 1], [], []>} : vector<8x128xbf16>, vector<128x128xbf16>, vector<8x128xf32> -> vector<8x128xf32>
    %c0_9 = arith.constant 0 : index
    %c0_10 = arith.constant 0 : index
    %12 = vector.load %arg7[%c0_9, %c0_10] : memref<1x128xf32, #tpu.memory_space<vmem>>, vector<1x128xf32>
    %13 = vector.broadcast %12 : vector<1x128xf32> to vector<8x128xf32>
    %14 = arith.addf %11, %13 : vector<8x128xf32>
    %cst_11 = arith.constant 0.000000e+00 : f32
    %15 = vector.broadcast %cst_11 : f32 to vector<8x128xf32>
    %16 = arith.maximumf %14, %15 : vector<8x128xf32>
    %17 = arith.truncf %16 : vector<8x128xf32> to vector<8x128xbf16>
    %c0_12 = arith.constant 0 : index
    %c0_13 = arith.constant 0 : index
    %18 = vector.load %arg8[%c0_12, %c0_13] : memref<128x128xbf16, #tpu.memory_space<vmem>>, vector<128x128xbf16>
    %cst_14 = arith.constant dense<0.000000e+00> : vector<8x128xf32>
    %19 = tpu.matmul %17, %18, %cst_14 {dimension_numbers = #tpu.dot_dimension_numbers<[1], [0], [0], [1], [0, 0, 1, 1], [], []>} : vector<8x128xbf16>, vector<128x128xbf16>, vector<8x128xf32> -> vector<8x128xf32>
    %c0_15 = arith.constant 0 : index
    %c0_16 = arith.constant 0 : index
    %20 = vector.load %arg9[%c0_15, %c0_16] : memref<1x128xf32, #tpu.memory_space<vmem>>, vector<1x128xf32>
    %21 = vector.broadcast %20 : vector<1x128xf32> to vector<8x128xf32>
    %22 = arith.addf %19, %21 : vector<8x128xf32>
    %23 = vector.extract_strided_slice %22 {offsets = [0, 0], sizes = [8, 2], strides = [1, 1]} : vector<8x128xf32> to vector<8x2xf32>
    %c0_17 = arith.constant 0 : index
    %c0_18 = arith.constant 0 : index
    %24 = vector.load %arg10[%c0_17, %c0_18] : memref<8x2xf32, #tpu.memory_space<vmem>>, vector<8x2xf32>
    tpu.vector_store %arg10[%c0_17, %c0_18], %23 {strides = array<i32>} : memref<8x2xf32, #tpu.memory_space<vmem>>, vector<8x2xf32>,
    %cst_19 = arith.constant dense<0xFF800000> : vector<8xf32>
    %25 = vector.multi_reduction <maximumf>, %22, %cst_19 [1] : vector<8x128xf32> to vector<8xf32>
    %26 = vector.shape_cast %25 : vector<8xf32> to vector<8x1xf32>
    %27 = vector.broadcast %26 : vector<8x1xf32> to vector<8x128xf32>
    %28 = arith.subf %22, %27 : vector<8x128xf32>
    %29 = math.exp %28 : vector<8x128xf32>
    %cst_20 = arith.constant dense<0.000000e+00> : vector<8xf32>
    %30 = vector.multi_reduction <add>, %29, %cst_20 [1] : vector<8x128xf32> to vector<8xf32>
    %31 = vector.shape_cast %30 : vector<8xf32> to vector<8x1xf32>
    %32 = math.log %31 : vector<8x1xf32>
    %33 = arith.addf %26, %32 : vector<8x1xf32>
    %34 = vector.broadcast %33 : vector<8x1xf32> to vector<8x128xf32>
    %35 = arith.subf %22, %34 : vector<8x128xf32>
    %c0_21 = arith.constant 0 : index
    %c0_22 = arith.constant 0 : index
    %36 = vector.load %arg2[%c0_21, %c0_22] : memref<8x1xi32, #tpu.memory_space<vmem>>, vector<8x1xi32>
    %37 = tpu.iota {dimensions = array<i32: 1>} : vector<8x128xi32>
    %38 = vector.broadcast %36 : vector<8x1xi32> to vector<8x128xi32>
    %39 = arith.cmpi eq, %37, %38 : vector<8x128xi32>
    %40 = arith.extui %39 : vector<8x128xi1> to vector<8x128xi32>
    %41 = arith.sitofp %40 : vector<8x128xi32> to vector<8x128xf32>
    %42 = arith.mulf %41, %35 : vector<8x128xf32>
    %cst_23 = arith.constant dense<0.000000e+00> : vector<8xf32>
    %43 = vector.multi_reduction <add>, %42, %cst_23 [1] : vector<8x128xf32> to vector<8xf32>
    %44 = vector.shape_cast %43 : vector<8xf32> to vector<8x1xf32>
    %cst_24 = arith.constant 0.000000e+00 : f32
    %45 = vector.broadcast %cst_24 : f32 to vector<8x1xf32>
    %46 = arith.subf %45, %44 : vector<8x1xf32>
    %c0_25 = arith.constant 0 : index
    %c0_26 = arith.constant 0 : index
    %47 = vector.load %arg3[%c0_25, %c0_26] : memref<1x128xf32, #tpu.memory_space<vmem>>, vector<1x128xf32>
    %48 = vector.broadcast %47 : vector<1x128xf32> to vector<8x128xf32>
    %49 = arith.mulf %41, %48 : vector<8x128xf32>
    %cst_27 = arith.constant dense<0.000000e+00> : vector<8xf32>
    %50 = vector.multi_reduction <add>, %49, %cst_27 [1] : vector<8x128xf32> to vector<8xf32>
    %51 = vector.shape_cast %50 : vector<8xf32> to vector<8x1xf32>
    %c8_i32 = arith.constant 8 : i32
    %52 = arith.muli %arg0, %c8_i32 : i32
    %53 = tpu.iota {dimensions = array<i32: 0>} : vector<8x1xi32>
    %54 = vector.broadcast %52 : i32 to vector<8x1xi32>
    %55 = arith.addi %54, %53 : vector<8x1xi32>
    %c8_i32_28 = arith.constant 8 : i32
    %56 = vector.broadcast %c8_i32_28 : i32 to vector<8x1xi32>
    %57 = arith.cmpi slt, %55, %56 : vector<8x1xi32>
    %58 = arith.mulf %51, %46 : vector<8x1xf32>
    %cst_29 = arith.constant 0.000000e+00 : f32
    %59 = vector.broadcast %cst_29 : f32 to vector<8x1xf32>
    %60 = arith.select %57, %58, %59 : vector<8x1xi1>, vector<8x1xf32>
    %61 = vector.shape_cast %60 : vector<8x1xf32> to vector<1x8x1xf32>
    %cst_30 = arith.constant dense<0.000000e+00> : vector<1xf32>
    %62 = vector.multi_reduction <add>, %61, %cst_30 [1, 2] : vector<1x8x1xf32> to vector<1xf32>
    %63 = vector.shape_cast %62 : vector<1xf32> to vector<1x1x1xf32>
    %64 = vector.extract %63[0, 0, 0] : f32 from vector<1x1x1xf32>
    %cst_31 = arith.constant 0.000000e+00 : f32
    %65 = vector.broadcast %cst_31 : f32 to vector<8x1xf32>
    %66 = arith.select %57, %51, %65 : vector<8x1xi1>, vector<8x1xf32>
    %67 = vector.shape_cast %66 : vector<8x1xf32> to vector<1x8x1xf32>
    %cst_32 = arith.constant dense<0.000000e+00> : vector<1xf32>
    %68 = vector.multi_reduction <add>, %67, %cst_32 [1, 2] : vector<1x8x1xf32> to vector<1xf32>
    %69 = vector.shape_cast %68 : vector<1xf32> to vector<1x1x1xf32>
    %70 = vector.extract %69[0, 0, 0] : f32 from vector<1x1x1xf32>
    %71 = tpu.iota {dimensions = array<i32: 2>} : vector<1x1x128xi32>
    %c0_i32 = arith.constant 0 : i32
    %72 = vector.broadcast %c0_i32 : i32 to vector<1x1x128xi32>
    %73 = arith.cmpi eq, %71, %72 : vector<1x1x128xi32>
    %c1_i32 = arith.constant 1 : i32
    %74 = vector.broadcast %c1_i32 : i32 to vector<1x1x128xi32>
    %75 = arith.cmpi eq, %71, %74 : vector<1x1x128xi32>
    %cst_33 = arith.constant 0.000000e+00 : f32
    %76 = vector.broadcast %70 : f32 to vector<1x1x128xf32>
    %77 = vector.broadcast %cst_33 : f32 to vector<1x1x128xf32>
    %78 = arith.select %75, %76, %77 : vector<1x1x128xi1>, vector<1x1x128xf32>
    %79 = vector.broadcast %64 : f32 to vector<1x1x128xf32>
    %80 = arith.select %73, %79, %78 : vector<1x1x128xi1>, vector<1x1x128xf32>
    %c0_34 = arith.constant 0 : index
    %c0_35 = arith.constant 0 : index
    %c0_36 = arith.constant 0 : index
    %81 = vector.load %arg11[%c0_34, %c0_35, %c0_36] : memref<1x1x128xf32, #tpu.memory_space<vmem>>, vector<1x1x128xf32>
    tpu.vector_store %arg11[%c0_34, %c0_35, %c0_36], %80 {strides = array<i32>} : memref<1x1x128xf32, #tpu.memory_space<vmem>>, vector<1x1x128xf32>,
    return
  }
  func.func @transform_0(%arg0: i32) -> (i32, i32) {
    %c0_i32 = arith.constant 0 : i32
    %c0_i32_0 = arith.constant 0 : i32
    return %arg0, %c0_i32 : i32, i32
  }
  func.func @transform_1(%arg0: i32) -> (i32, i32) {
    %c0_i32 = arith.constant 0 : i32
    %c0_i32_0 = arith.constant 0 : i32
    return %arg0, %c0_i32 : i32, i32
  }
  func.func @transform_2(%arg0: i32) -> (i32, i32) {
    %c0_i32 = arith.constant 0 : i32
    %c0_i32_0 = arith.constant 0 : i32
    %c0_i32_1 = arith.constant 0 : i32
    return %c0_i32, %c0_i32_0 : i32, i32
  }
  func.func @transform_3(%arg0: i32) -> (i32, i32) {
    %c0_i32 = arith.constant 0 : i32
    %c0_i32_0 = arith.constant 0 : i32
    %c0_i32_1 = arith.constant 0 : i32
    return %c0_i32, %c0_i32_0 : i32, i32
  }
  func.func @transform_4(%arg0: i32) -> (i32, i32) {
    %c0_i32 = arith.constant 0 : i32
    %c0_i32_0 = arith.constant 0 : i32
    %c0_i32_1 = arith.constant 0 : i32
    return %c0_i32, %c0_i32_0 : i32, i32
  }
  func.func @transform_5(%arg0: i32) -> (i32, i32) {
    %c0_i32 = arith.constant 0 : i32
    %c0_i32_0 = arith.constant 0 : i32
    %c0_i32_1 = arith.constant 0 : i32
    return %c0_i32, %c0_i32_0 : i32, i32
  }
  func.func @transform_6(%arg0: i32) -> (i32, i32) {
    %c0_i32 = arith.constant 0 : i32
    %c0_i32_0 = arith.constant 0 : i32
    %c0_i32_1 = arith.constant 0 : i32
    return %c0_i32, %c0_i32_0 : i32, i32
  }
  func.func @transform_7(%arg0: i32) -> (i32, i32) {
    %c0_i32 = arith.constant 0 : i32
    %c0_i32_0 = arith.constant 0 : i32
    %c0_i32_1 = arith.constant 0 : i32
    return %c0_i32, %c0_i32_0 : i32, i32
  }
  func.func @transform_8(%arg0: i32) -> (i32, i32) {
    %c0_i32 = arith.constant 0 : i32
    %c0_i32_0 = arith.constant 0 : i32
    %c0_i32_1 = arith.constant 0 : i32
    return %c0_i32, %c0_i32_0 : i32, i32
  }
  func.func @transform_9(%arg0: i32) -> (i32, i32) {
    %c0_i32 = arith.constant 0 : i32
    %c0_i32_0 = arith.constant 0 : i32
    return %arg0, %c0_i32 : i32, i32
  }
  func.func @transform_10(%arg0: i32) -> (i32, i32, i32) {
    %c0_i32 = arith.constant 0 : i32
    %c0_i32_0 = arith.constant 0 : i32
    %c0_i32_1 = arith.constant 0 : i32
    return %arg0, %c0_i32, %c0_i32_0 : i32, i32, i32
  }
}

</mosaic_0001>

<llo_original>
// kernel: _forward_impl.1
$region0: #{_forward_impl.1}
  #allocation0 [shape = 'u32[]', space=smem, size = 0x4, offset = 0x4, fixed_abs, tag = 'smem constant byte address 0x4 - core index']
  #allocation1 [shape = 'u32[72,128]{1,0:T(1,128)}', space=vmem, size = 0x9000, scoped, tag = 'internal scratch']
  %s0 = inlined_call_operand.vmem [shape: f32[8,32], index: 0, kind: input, shape index: {}]
  %s1 = inlined_call_operand.vmem [shape: s32[8,1], index: 1, kind: input, shape index: {}]
  %s2 = inlined_call_operand.vmem [shape: f32[1,128], index: 2, kind: input, shape index: {}]
  %s3 = inlined_call_operand.hbm [shape: bf16[32,128], index: 3, kind: input, shape index: {}]
  %s4 = inlined_call_operand.vmem [shape: f32[1,128], index: 4, kind: input, shape index: {}]
  %s5 = inlined_call_operand.hbm [shape: bf16[128,128], index: 5, kind: input, shape index: {}]
  %s6 = inlined_call_operand.vmem [shape: f32[1,128], index: 6, kind: input, shape index: {}]
  %s7 = inlined_call_operand.hbm [shape: bf16[128,128], index: 7, kind: input, shape index: {}]
  %s8 = inlined_call_operand.vmem [shape: f32[1,128], index: 8, kind: input, shape index: {}]
  %s9 = inlined_call_operand.vmem [shape: f32[8,2], index: 9, kind: output, shape index: {0}]
  %s10 = inlined_call_operand.vmem [shape: f32[1,1,128], index: 10, kind: output, shape index: {1}]
  %11 = xla_tuple %s9, %s10
  %s12 = sld [smem:[#allocation0]]
  $region66: #{_forward_impl.1} parent=0
    _
  %s14 = ssub.s32 1, %s12
  %s15 = scalar_select 0, %s14, %s12
  $region1: #{_forward_impl.1} parent=0
    #allocation2 [shape = 'u8[8192]{0}', space=vmem, size = 0x2000, scoped, tag = 'input window, operand 3, single buffered']
    #allocation3 [shape = 's32[1]{0}', space=sflag, size = 0x4, scoped, tag = 'scoped memory for _forward_impl.1']
    #allocation4 [shape = 'u8[32768]{0}', space=vmem, size = 0x8000, scoped, tag = 'input window, operand 5, single buffered']
    #allocation5 [shape = 's32[1]{0}', space=sflag, size = 0x4, scoped, tag = 'scoped memory for _forward_impl.1']
    #allocation6 [shape = 'u8[32768]{0}', space=vmem, size = 0x8000, scoped, tag = 'input window, operand 7, single buffered']
    %16 = vsyncpa [#allocation3], 0
    %17 = vsyncpa [#allocation5], 0
    // Predicated region
    $region2: #{_forward_impl.1} parent=1 // pred_check
      _
    $region3: #{_forward_impl.1} parent=1 // pred_check_branch
      %19 = sbr.rel (0) target = $region5
    $region4: #{_forward_impl.1} parent=1 // pred_region
      _
    $region5: #{_forward_impl.1} parent=1 // pred_fallthru
      _
    // Predicated region
    $region6: #{_forward_impl.1} parent=1 // pred_check
      _
    $region7: #{_forward_impl.1} parent=1 // pred_check_branch
      %21 = sbr.rel (0) target = $region9
    $region8: #{_forward_impl.1} parent=1 // pred_region
      _
    $region9: #{_forward_impl.1} parent=1 // pred_fallthru
      _
    // Predicated region
    $region10: #{_forward_impl.1} parent=1 // pred_check
      _
    $region11: #{_forward_impl.1} parent=1 // pred_check_branch
      %23 = sbr.rel (0) target = $region13
    $region12: #{_forward_impl.1} parent=1 // pred_region
      _
    $region13: #{_forward_impl.1} parent=1 // pred_fallthru
      _
    // Predicated region
    $region14: #{_forward_impl.1} parent=1 // pred_check
      _
    $region15: #{_forward_impl.1} parent=1 // pred_check_branch
      %25 = sbr.rel (0) target = $region17
    $region16: #{_forward_impl.1} parent=1 // pred_region
      %27 = vsyncadd [#allocation3], 0
      %s28 = sshll.u32 %s3, 4
      %s29 = int_to_ptr.hbm [resolvable:$true] %s28
      %s30 = sshll.u32 [#allocation2], 4
      %s31 = int_to_ptr.vmem [resolvable:$true] %s30
      %36 = dma.hbm_to_vmem [thread:$0]  %s29, 256, %s31, [#allocation3], 64, 64, 4
    $region17: #{_forward_impl.1} parent=1 // pred_fallthru
      _
    // Predicated region
    $region18: #{_forward_impl.1} parent=1 // pred_check
      _
    $region19: #{_forward_impl.1} parent=1 // pred_check_branch
      %38 = sbr.rel (0) target = $region21
    $region20: #{_forward_impl.1} parent=1 // pred_region
      _
    $region21: #{_forward_impl.1} parent=1 // pred_fallthru
      _
    // Predicated region
    $region22: #{_forward_impl.1} parent=1 // pred_check
      _
    $region23: #{_forward_impl.1} parent=1 // pred_check_branch
      %40 = sbr.rel (0) target = $region25
    $region24: #{_forward_impl.1} parent=1 // pred_region
      %42 = vsyncadd [#allocation5], 0
      %s43 = sshll.u32 %s5, 4
      %s44 = int_to_ptr.hbm [resolvable:$true] %s43
      %s45 = sshll.u32 [#allocation4], 4
      %s46 = int_to_ptr.vmem [resolvable:$true] %s45
      %51 = dma.hbm_to_vmem [thread:$0]  %s44, 1024, %s46, [#allocation5], 64, 64, 4
    $region25: #{_forward_impl.1} parent=1 // pred_fallthru
      _
    // Predicated region
    $region26: #{_forward_impl.1} parent=1 // pred_check
      _
    $region27: #{_forward_impl.1} parent=1 // pred_check_branch
      %53 = sbr.rel (0) target = $region29
    $region28: #{_forward_impl.1} parent=1 // pred_region
      _
    $region29: #{_forward_impl.1} parent=1 // pred_fallthru
      _
    // Predicated region
    $region30: #{_forward_impl.1} parent=1 // pred_check
      _
    $region31: #{_forward_impl.1} parent=1 // pred_check_branch
      %55 = sbr.rel (0) target = $region33
    $region32: #{_forward_impl.1} parent=1 // pred_region
      %57 = vsyncadd [#allocation5], 0
      %s58 = sshll.u32 %s7, 4
      %s59 = int_to_ptr.hbm [resolvable:$true] %s58
      %s60 = sshll.u32 [#allocation6], 4
      %s61 = int_to_ptr.vmem [resolvable:$true] %s60
      %66 = dma.hbm_to_vmem [thread:$0]  %s59, 1024, %s61, [#allocation5], 64, 64, 4
    $region33: #{_forward_impl.1} parent=1 // pred_fallthru
      _
    // Predicated region
    $region34: #{_forward_impl.1} parent=1 // pred_check
      _
    $region35: #{_forward_impl.1} parent=1 // pred_check_branch
      %68 = sbr.rel (0) target = $region37
    $region36: #{_forward_impl.1} parent=1 // pred_region
      _
    $region37: #{_forward_impl.1} parent=1 // pred_fallthru
      _
    // Predicated region
    $region38: #{_forward_impl.1} parent=1 // pred_check
      _
    $region39: #{_forward_impl.1} parent=1 // pred_check_branch
      %70 = sbr.rel (0) target = $region41
    $region40: #{_forward_impl.1} parent=1 // pred_region
      %72 = dma.done [#allocation3], 256
    $region41: #{_forward_impl.1} parent=1 // pred_fallthru
      _
    // Predicated region
    $region42: #{_forward_impl.1} parent=1 // pred_check
      _
    $region43: #{_forward_impl.1} parent=1 // pred_check_branch
      %74 = sbr.rel (0) target = $region45
    $region44: #{_forward_impl.1} parent=1 // pred_region
      %76 = dma.done [#allocation5], 1024
    $region45: #{_forward_impl.1} parent=1 // pred_fallthru
      _
    // Predicated region
    $region46: #{_forward_impl.1} parent=1 // pred_check
      _
    $region47: #{_forward_impl.1} parent=1 // pred_check_branch
      %78 = sbr.rel (0) target = $region49
    $region48: #{_forward_impl.1} parent=1 // pred_region
      %80 = dma.done [#allocation5], 1024
    $region49: #{_forward_impl.1} parent=1 // pred_fallthru
      _
    %v82 = vld [vmem:[%s0] sm:$0xff]
    %v83 = vpack.c.bf16 %v82, %v82
    %v84 = vld [vmem:[#allocation2] sm:$0xf]
    %v85 = vld [vmem:[#allocation2 + $0x4] sm:$0xf]
    %v86 = vld [vmem:[#allocation2 + $0x8] sm:$0xf]
    %v87 = vld [vmem:[#allocation2 + $0xc] sm:$0xf]
    %v88 = vld [vmem:[%s4] sm:$0x1]
    %v90 = vperm.slane %v88, 0
    %v96 = vunpack.c.l.b16 %v84
    %v97 = vunpack.c.l.b16 %v85
    %v98 = vunpack.c.l.b16 %v86
    %v99 = vunpack.c.l.b16 %v87
    %v100 = vpack.c.b16 %v97, %v96
    %v101 = vpack.c.b16 %v99, %v98
    %vm104 = vcmask 261120
    %v106 = vsel %vm104, %v83, 0
    %108 = vmatpush.bf16.msra.mxu0 0
    %109 = vmatpush.bf16.msra.mxu0 0
    %110 = vmatpush.bf16.msra.mxu0 0
    %111 = vmatpush.bf16.msra.mxu0 0
    %112 = vmatpush.bf16.msra.mxu0 0
    %113 = vmatpush.bf16.msra.mxu0 0
    %114 = vmatpush.bf16.msra.mxu0 %v101
    %115 = vmatpush.bf16.msra.mxu0 %v100
    %116 = vmatmul.bf16.gmra.mxu0 %v106
    %v117 = vpop.f32.mrf.mxu0
    %v118 = vadd.f32 %v90, %v117
    %v119 = vpop.f32.mrf.mxu0
    %120 = vdwg.mxu0
    %v121 = vmax.f32 %v118, 0.0
    %v122 = vpack.c.bf16 %v121, %v121
    %v123 = vld [vmem:[#allocation4] sm:$0xf]
    %v124 = vld [vmem:[#allocation4 + $0x4] sm:$0xf]
    %v125 = vld [vmem:[#allocation4 + $0x8] sm:$0xf]
    %v126 = vld [vmem:[#allocation4 + $0xc] sm:$0xf]
    %v127 = vld [vmem:[#allocation4 + $0x10] sm:$0xf]
    %v128 = vld [vmem:[#allocation4 + $0x14] sm:$0xf]
    %v129 = vld [vmem:[#allocation4 + $0x18] sm:$0xf]
    %v130 = vld [vmem:[#allocation4 + $0x1c] sm:$0xf]
    %v131 = vld [vmem:[#allocation4 + $0x20] sm:$0xf]
    %v132 = vld [vmem:[#allocation4 + $0x24] sm:$0xf]
    %v133 = vld [vmem:[#allocation4 + $0x28] sm:$0xf]
    %v134 = vld [vmem:[#allocation4 + $0x2c] sm:$0xf]
    %v135 = vld [vmem:[#allocation4 + $0x30] sm:$0xf]
    %v136 = vld [vmem:[#allocation4 + $0x34] sm:$0xf]
    %v137 = vld [vmem:[#allocation4 + $0x38] sm:$0xf]
    %v138 = vld [vmem:[#allocation4 + $0x3c] sm:$0xf]
    %v139 = vld [vmem:[%s6] sm:$0x1]
    %v141 = vperm.slane %v139, 0
    %v159 = vunpack.c.l.b16 %v123
    %v160 = vunpack.c.l.b16 %v124
    %v161 = vunpack.c.l.b16 %v125
    %v162 = vunpack.c.l.b16 %v126
    %v163 = vunpack.c.l.b16 %v127
    %v164 = vunpack.c.l.b16 %v128
    %v165 = vunpack.c.l.b16 %v129
    %v166 = vunpack.c.l.b16 %v130
    %v167 = vunpack.c.l.b16 %v131
    %v168 = vunpack.c.l.b16 %v132
    %v169 = vunpack.c.l.b16 %v133
    %v170 = vunpack.c.l.b16 %v134
    %v171 = vunpack.c.l.b16 %v135
    %v172 = vunpack.c.l.b16 %v136
    %v173 = vunpack.c.l.b16 %v137
    %v174 = vunpack.c.l.b16 %v138
    %v175 = vpack.c.b16 %v160, %v159
    %v176 = vpack.c.b16 %v162, %v161
    %v177 = vpack.c.b16 %v164, %v163
    %v178 = vpack.c.b16 %v166, %v165
    %v179 = vpack.c.b16 %v168, %v167
    %v180 = vpack.c.b16 %v170, %v169
    %v181 = vpack.c.b16 %v172, %v171
    %v182 = vpack.c.b16 %v174, %v173
    %191 = vmatpush.bf16.msra.mxu0 %v182
    %192 = vmatpush.bf16.msra.mxu0 %v181
    %193 = vmatpush.bf16.msra.mxu0 %v180
    %194 = vmatpush.bf16.msra.mxu0 %v179
    %195 = vmatpush.bf16.msra.mxu0 %v178
    %196 = vmatpush.bf16.msra.mxu0 %v177
    %197 = vmatpush.bf16.msra.mxu0 %v176
    %198 = vmatpush.bf16.msra.mxu0 %v175
    %199 = vmatmul.bf16.gmra.mxu0 %v122
    %v200 = vpop.f32.mrf.mxu0
    %v201 = vadd.f32 %v141, %v200
    %v202 = vpop.f32.mrf.mxu0
    %203 = vdwg.mxu0
    %v204 = vmax.f32 %v201, 0.0
    %v205 = vpack.c.bf16 %v204, %v204
    %v206 = vld [vmem:[#allocation6] sm:$0xf]
    %v207 = vld [vmem:[#allocation6 + $0x4] sm:$0xf]
    %v208 = vld [vmem:[#allocation6 + $0x8] sm:$0xf]
    %v209 = vld [vmem:[#allocation6 + $0xc] sm:$0xf]
    %v210 = vld [vmem:[#allocation6 + $0x10] sm:$0xf]
    %v211 = vld [vmem:[#allocation6 + $0x14] sm:$0xf]
    %v212 = vld [vmem:[#allocation6 + $0x18] sm:$0xf]
    %v213 = vld [vmem:[#allocation6 + $0x1c] sm:$0xf]
    %v214 = vld [vmem:[#allocation6 + $0x20] sm:$0xf]
    %v215 = vld [vmem:[#allocation6 + $0x24] sm:$0xf]
    %v216 = vld [vmem:[#allocation6 + $0x28] sm:$0xf]
    %v217 = vld [vmem:[#allocation6 + $0x2c] sm:$0xf]
    %v218 = vld [vmem:[#allocation6 + $0x30] sm:$0xf]
    %v219 = vld [vmem:[#allocation6 + $0x34] sm:$0xf]
    %v220 = vld [vmem:[#allocation6 + $0x38] sm:$0xf]
    %v221 = vld [vmem:[#allocation6 + $0x3c] sm:$0xf]
    %v222 = vld [vmem:[%s8] sm:$0x1]
    %v224 = vperm.slane %v222, 0
    %v242 = vunpack.c.l.b16 %v206
    %v243 = vunpack.c.l.b16 %v207
    %v244 = vunpack.c.l.b16 %v208
    %v245 = vunpack.c.l.b16 %v209
    %v246 = vunpack.c.l.b16 %v210
    %v247 = vunpack.c.l.b16 %v211
    %v248 = vunpack.c.l.b16 %v212
    %v249 = vunpack.c.l.b16 %v213
    %v250 = vunpack.c.l.b16 %v214
    %v251 = vunpack.c.l.b16 %v215
    %v252 = vunpack.c.l.b16 %v216
    %v253 = vunpack.c.l.b16 %v217
    %v254 = vunpack.c.l.b16 %v218
    %v255 = vunpack.c.l.b16 %v219
    %v256 = vunpack.c.l.b16 %v220
    %v257 = vunpack.c.l.b16 %v221
    %v258 = vpack.c.b16 %v243, %v242
    %v259 = vpack.c.b16 %v245, %v244
    %v260 = vpack.c.b16 %v247, %v246
    %v261 = vpack.c.b16 %v249, %v248
    %v262 = vpack.c.b16 %v251, %v250
    %v263 = vpack.c.b16 %v253, %v252
    %v264 = vpack.c.b16 %v255, %v254
    %v265 = vpack.c.b16 %v257, %v256
    %274 = vmatpush.bf16.msra.mxu0 %v265
    %275 = vmatpush.bf16.msra.mxu0 %v264
    %276 = vmatpush.bf16.msra.mxu0 %v263
    %277 = vmatpush.bf16.msra.mxu0 %v262
    %278 = vmatpush.bf16.msra.mxu0 %v261
    %279 = vmatpush.bf16.msra.mxu0 %v260
    %280 = vmatpush.bf16.msra.mxu0 %v259
    %281 = vmatpush.bf16.msra.mxu0 %v258
    %282 = vmatmul.bf16.gmra.mxu0 %v205
    %v283 = vpop.f32.mrf.mxu0
    %v284 = vadd.f32 %v224, %v283
    %v285 = vpop.f32.mrf.mxu0
    %286 = vdwg.mxu0
    %vm287 = vcmask 15360
    %288 = vst.msk [vmem:[%s9] sm:$0xff] %vm287, %v284
    %289 = vmax.xlane.f32.xlu0 %v284
    %v290 = vpop.xlane.xlu0 %289
    %v291 = vsub.f32 %v284, %v290
    %v292 = vmul.f32 %v291, 1.442695
    %v293 = vpow.pop %v292
    %294 = vadd.xlane.f32.xlu0 %v293
    %v295 = vpop.xlane.xlu0 %294
    %v296 = vlog2.pop %v295
    %v297 = vmul.f32 %v296, 0.6931472
    %v298 = vadd.f32 %v290, %v297
    %v299 = vsub.f32 %v284, %v298
    %v300 = vld [vmem:[%s1] sm:$0xff]
    %v301 = vlaneseq
    %v302 = vand.u32 %v301, 127
    %303 = vset.pattern.permute.xlu0 0
    %304 = vperm.xlu0 %303, %v300
    %v305 = vpop.permute.xlu0 %304
    %vm306 = vcmp.eq.s32.totalorder %v302, %v305
    %v307 = vsel %vm306, 1, 0
    %v308 = vcvt.s32.f32 %v307
    %v309 = vmul.f32 %v308, %v299
    %310 = vadd.xlane.f32.xlu0 %v309
    %v311 = vpop.xlane.xlu0 %310
    %v312 = vsub.f32 0.0, %v311
    %v313 = vld [vmem:[%s2] sm:$0x1]
    %v315 = vperm.slane %v313, 0
    %v317 = vmul.f32 %v308, %v315
    %318 = vadd.xlane.f32.xlu0 %v317
    %v319 = vpop.xlane.xlu0 %318
    %s320 = smul.u32 0, 8
    %v321 = vlaneseq
    %v322 = vshrl.u32 %v321, 7
    %v323 = vstv %s320
    %v324 = vadd.s32 %v323, %v322
    %vm325 = vcmp.lt.s32.totalorder %v324, 8
    %v326 = vmul.f32 %v319, %v312
    %v327 = vsel %vm325, %v326, 0.0
    %vm328 = vcmask 7168
    %v329 = vsel %vm328, %v327, 0.0
    %330 = vadd.xlane.f32.xlu0 %v329
    %v331 = vpop.xlane.xlu0 %330
    %v332 = vrot.slane %v331, 4
    %v333 = vadd.f32 %v331, %v332
    %v334 = vrot.slane %v333, 2
    %v335 = vadd.f32 %v333, %v334
    %v336 = vrot.slane %v335, 1
    %v337 = vadd.f32 %v335, %v336
    %s338 = vtos %v337
    %v339 = vsel %vm325, %v319, 0.0
    %v340 = vsel %vm328, %v339, 0.0
    %341 = vadd.xlane.f32.xlu0 %v340
    %v342 = vpop.xlane.xlu0 %341
    %v343 = vrot.slane %v342, 4
    %v344 = vadd.f32 %v342, %v343
    %v345 = vrot.slane %v344, 2
    %v346 = vadd.f32 %v344, %v345
    %v347 = vrot.slane %v346, 1
    %v348 = vadd.f32 %v346, %v347
    %s349 = vtos %v348
    %vm350 = vcmp.eq.s32.totalorder %v302, 0
    %vm351 = vcmp.eq.s32.totalorder %v302, 1
    %v352 = vstv %s349
    %v353 = vsel %vm351, %v352, 0.0
    %v354 = vstv %s338
    %v355 = vsel %vm350, %v354, %v353
    %356 = vst [vmem:[%s10] sm:$0x1] %v355
    // Predicated region
    $region50: #{_forward_impl.1} parent=1 // pred_check
      _
    $region51: #{_forward_impl.1} parent=1 // pred_check_branch
      %358 = sbr.rel (0) target = $region53
    $region52: #{_forward_impl.1} parent=1 // pred_region
      _
    $region53: #{_forward_impl.1} parent=1 // pred_fallthru
      _
    // Predicated region
    $region54: #{_forward_impl.1} parent=1 // pred_check
      _
    $region55: #{_forward_impl.1} parent=1 // pred_check_branch
      %360 = sbr.rel (0) target = $region57
    $region56: #{_forward_impl.1} parent=1 // pred_region
      _
    $region57: #{_forward_impl.1} parent=1 // pred_fallthru
      _
    // Predicated region
    $region58: #{_forward_impl.1} parent=1 // pred_check
      _
    $region59: #{_forward_impl.1} parent=1 // pred_check_branch
      %362 = sbr.rel (0) target = $region61
    $region60: #{_forward_impl.1} parent=1 // pred_region
      _
    $region61: #{_forward_impl.1} parent=1 // pred_fallthru
      _
    // Predicated region
    $region62: #{_forward_impl.1} parent=1 // pred_check
      _
    $region63: #{_forward_impl.1} parent=1 // pred_check_branch
      %364 = sbr.rel (0) target = $region65
    $region64: #{_forward_impl.1} parent=1 // pred_region
      _
    $region65: #{_forward_impl.1} parent=1 // pred_fallthru
      _
    %365 = vsyncpa [#allocation3], 1
    %366 = vsyncpa [#allocation5], 1

</llo_original>
